<compile_context>
chip_gen: v5e
topology: v5e:2x2
jax: 0.10.0
libtpu: 0.0.40
codegen_flags: <defaults>
</compile_context>

<pallas_src>
import functools

import jax
import jax.numpy as jnp
from jax.experimental import pallas as pl
from jax.experimental.pallas import tpu as pltpu

_HIDDEN = 128
_LANES = 128            # lane-dense padded width for the fc3 compute block
_MAX_TILE_B = 4096      # batch-tile cap (~12 MB VMEM/step incl. intermediates; see header)
_NEG_BIG = -1.0e30      # pad-lane logit bias; f32 exp(-1e30 - m) underflows to exactly 0
_VMEM_LIMIT = 40 << 20  # > needed ~12 MB, < v7x 64 MiB physical, fixes v5e 16 MiB default


def _round_up(x, m):
    return ((x + m - 1) // m) * m


def _policy_kernel(x_ref, w1_ref, b1_ref, w2_ref, b2_ref, w3_ref, b3_ref, out_ref,
                   *, n_actions):
    # fc1 + ReLU  (bf16 MXU inputs, f32 accumulation)
    x = x_ref[...].astype(jnp.bfloat16)
    h1 = jnp.dot(x, w1_ref[...], preferred_element_type=jnp.float32) + b1_ref[...]
    h1 = jnp.maximum(h1, 0.0)

    # fc2 + ReLU
    h2 = jnp.dot(h1.astype(jnp.bfloat16), w2_ref[...],
                 preferred_element_type=jnp.float32) + b2_ref[...]
    h2 = jnp.maximum(h2, 0.0)

    # fc3 logits, computed lane-dense into a 128-wide block; padded columns carry a
    # -1e30 bias so they contribute exactly 0 to the softmax sum.
    logits = jnp.dot(h2.astype(jnp.bfloat16), w3_ref[...],
                     preferred_element_type=jnp.float32) + b3_ref[...]

    # numerically-stable softmax over the feature axis
    m = jnp.max(logits, axis=-1, keepdims=True)
    e = jnp.exp(logits - m)
    d = jnp.sum(e, axis=-1, keepdims=True)
    r = 1.0 / d                                   # exact f32 reciprocal of (tb,1) column

    # store only the real action lanes -> output is (B, n_actions), no post-kernel slice
    out_ref[...] = (e[:, :n_actions] * r).astype(out_ref.dtype)


def prepare_params(w1, b1, w2, b2, w3, b3):
    """One-time parameter prep (hoisted out of the forward path).

    Returns (w1b, b1, w2b, b2, w3p, b3p): bf16 weights for the MXU, biases in f32,
    fc3 zero-padded to 128 lanes with pad-lane bias -1e30 (must underflow in f32 exp).
    """
    hidden = w1.shape[1]
    n_actions = w3.shape[1]
    w1b = w1.astype(jnp.bfloat16)
    w2b = w2.astype(jnp.bfloat16)
    w3p = jnp.zeros((hidden, _LANES), jnp.bfloat16).at[:, :n_actions].set(
        w3.astype(jnp.bfloat16))
    b3p = jnp.full((1, _LANES), _NEG_BIG, jnp.float32).at[:, :n_actions].set(
        b3.reshape(1, -1))
    return w1b, b1.reshape(1, -1), w2b, b2.reshape(1, -1), w3p, b3p


@functools.partial(jax.jit, static_argnames=("n_actions",))
def policy_network_forward(state, w1b, b1, w2b, b2, w3p, b3p, *, n_actions):
    """state: (B, input_dims) f32.  Returns (B, n_actions) action probabilities (f32)."""
    batch, input_dims = state.shape
    hidden = w1b.shape[1]

    # Batch tile:
    #  - tiny batches: one step, block == full batch (always a legal block shape).
    #  - otherwise: >= 2 grid steps (v7x megacore gets work on both TCs), rows rounded
    #    up to the 8-row sublane granule, capped at _MAX_TILE_B for VMEM.
    if batch <= 64:
        tb = batch
    else:
        tb = min(_MAX_TILE_B, _round_up(pl.cdiv(batch, 2), 8))
    grid = (pl.cdiv(batch, tb),)

    resident = lambda shape: pl.BlockSpec(shape, lambda i: (0, 0))  # stays in VMEM
    kernel = functools.partial(_policy_kernel, n_actions=n_actions)

    return pl.pallas_call(
        kernel,
        out_shape=jax.ShapeDtypeStruct((batch, n_actions), jnp.float32),
        grid=grid,
        in_specs=[
            pl.BlockSpec((tb, input_dims), lambda i: (i, 0)),   # x tile (pipelined)
            resident((input_dims, hidden)),                     # w1 (bf16)
            resident((1, hidden)),                              # b1 (f32)
            resident((hidden, hidden)),                         # w2 (bf16)
            resident((1, hidden)),                              # b2 (f32)
            resident((hidden, _LANES)),                         # w3 (bf16, lane-padded)
            resident((1, _LANES)),                              # b3 (f32, -1e30 pad)
        ],
        out_specs=pl.BlockSpec((tb, n_actions), lambda i: (i, 0)),
        compiler_params=pltpu.CompilerParams(
            dimension_semantics=("parallel",),                  # megacore-shardable axis
            vmem_limit_bytes=_VMEM_LIMIT,
        ),
    )(state, w1b, b1, w2b, b2, w3p, b3p)


def init_params(key, input_dims, n_actions, hidden=_HIDDEN):
    """Deterministic PyTorch-style (Kaiming-uniform-ish) init. Weights stored (in, out)."""
    keys = jax.random.split(key, 6)

    def linear(kw, kb, fan_in, fan_out):
        bound = 1.0 / jnp.sqrt(jnp.float32(fan_in))
        w = jax.random.uniform(kw, (fan_in, fan_out), jnp.float32, -bound, bound)
        b = jax.random.uniform(kb, (1, fan_out), jnp.float32, -bound, bound)
        return w, b

    w1, b1 = linear(keys[0], keys[1], input_dims, hidden)
    w2, b2 = linear(keys[2], keys[3], hidden, hidden)
    w3, b3 = linear(keys[4], keys[5], hidden, n_actions)
    return w1, b1, w2, b2, w3, b3


def _reference_forward(state, w1, b1, w2, b2, w3, b3):
    h1 = jnp.maximum(state @ w1 + b1, 0.0)
    h2 = jnp.maximum(h1 @ w2 + b2, 0.0)
    return jax.nn.softmax(h2 @ w3 + b3, axis=-1)


if __name__ == "__main__":
    # Small shapes consistent with the module: batch=2, input_dims=16, n_actions=8
    batch, input_dims, n_actions = 2, 16, 8

    key = jax.random.PRNGKey(0)
    k_params, k_state = jax.random.split(key)

    params = init_params(k_params, input_dims, n_actions)
    prepped = prepare_params(*params)

    state = jax.random.normal(k_state, (batch, input_dims), jnp.float32)
    probs = policy_network_forward(state, *prepped, n_actions=n_actions)
    probs = jax.block_until_ready(probs)

    # sanity: rows are valid probability distributions, and match f32 reference
    ref = _reference_forward(state, *params)
    assert probs.shape == (batch, n_actions)
    assert bool(jnp.all(jnp.isfinite(probs)))
    assert bool(jnp.allclose(jnp.sum(probs, axis=1), 1.0, atol=1e-4))
    assert bool(jnp.allclose(probs, ref, atol=2e-2))  # bf16 matmul inputs, f32 accumulation

    # also exercise the multi-step (pipelined / megacore) batch grid
    k_state2 = jax.random.fold_in(k_state, 1)
    batch2 = 304                                   # -> tb=152, grid=(2,)
    state2 = jax.random.normal(k_state2, (batch2, input_dims), jnp.float32)
    probs2 = jax.block_until_ready(
        policy_network_forward(state2, *prepped, n_actions=n_actions))
    ref2 = _reference_forward(state2, *params)
    assert probs2.shape == (batch2, n_actions)
    assert bool(jnp.allclose(jnp.sum(probs2, axis=1), 1.0, atol=1e-4))
    assert bool(jnp.allclose(probs2, ref2, atol=2e-2))

    print("KERNEL_OK")
</pallas_src>

<mosaic_0001>
module attributes {stable_mosaic.version = 11 : i64} {
  func.func @_policy_kernel(%arg0: i32, %arg1: memref<2x16xf32, #tpu.memory_space<vmem>>, %arg2: memref<16x128xbf16, #tpu.memory_space<vmem>>, %arg3: memref<1x128xf32, #tpu.memory_space<vmem>>, %arg4: memref<128x128xbf16, #tpu.memory_space<vmem>>, %arg5: memref<1x128xf32, #tpu.memory_space<vmem>>, %arg6: memref<128x128xbf16, #tpu.memory_space<vmem>>, %arg7: memref<1x128xf32, #tpu.memory_space<vmem>>, %arg8: memref<2x8xf32, #tpu.memory_space<vmem>>) attributes {dimension_semantics = [#tpu.dimension_semantics<parallel>], iteration_bounds = array<i64: 1>, scalar_prefetch = 0 : i64, scratch_operands = 0 : i64, tpu.core_type = #tpu.core_type<tc>, window_params = [{transform_indices = @transform_0, window_bounds = array<i64: 2, 16>}, {pipeline_mode = #tpu.pipeline_mode<synchronous>, transform_indices = @transform_1, window_bounds = array<i64: 16, 128>}, {pipeline_mode = #tpu.pipeline_mode<synchronous>, transform_indices = @transform_2, window_bounds = array<i64: 1, 128>}, {pipeline_mode = #tpu.pipeline_mode<synchronous>, transform_indices = @transform_3, window_bounds = array<i64: 128, 128>}, {pipeline_mode = #tpu.pipeline_mode<synchronous>, transform_indices = @transform_4, window_bounds = array<i64: 1, 128>}, {pipeline_mode = #tpu.pipeline_mode<synchronous>, transform_indices = @transform_5, window_bounds = array<i64: 128, 128>}, {pipeline_mode = #tpu.pipeline_mode<synchronous>, transform_indices = @transform_6, window_bounds = array<i64: 1, 128>}, {transform_indices = @transform_7, window_bounds = array<i64: 2, 8>}]} {
    %c0 = arith.constant 0 : index
    %c0_0 = arith.constant 0 : index
    %0 = vector.load %arg1[%c0, %c0_0] : memref<2x16xf32, #tpu.memory_space<vmem>>, vector<2x16xf32>
    %1 = arith.truncf %0 : vector<2x16xf32> to vector<2x16xbf16>
    %c0_1 = arith.constant 0 : index
    %c0_2 = arith.constant 0 : index
    %2 = vector.load %arg2[%c0_1, %c0_2] : memref<16x128xbf16, #tpu.memory_space<vmem>>, vector<16x128xbf16>
    %cst = arith.constant dense<0.000000e+00> : vector<2x128xf32>
    %3 = tpu.matmul %1, %2, %cst {dimension_numbers = #tpu.dot_dimension_numbers<[1], [0], [0], [1], [0, 0, 1, 1], [], []>} : vector<2x16xbf16>, vector<16x128xbf16>, vector<2x128xf32> -> vector<2x128xf32>
    %c0_3 = arith.constant 0 : index
    %c0_4 = arith.constant 0 : index
    %4 = vector.load %arg3[%c0_3, %c0_4] : memref<1x128xf32, #tpu.memory_space<vmem>>, vector<1x128xf32>
    %5 = vector.broadcast %4 : vector<1x128xf32> to vector<2x128xf32>
    %6 = arith.addf %3, %5 : vector<2x128xf32>
    %cst_5 = arith.constant 0.000000e+00 : f32
    %7 = vector.broadcast %cst_5 : f32 to vector<2x128xf32>
    %8 = arith.maximumf %6, %7 : vector<2x128xf32>
    %9 = arith.truncf %8 : vector<2x128xf32> to vector<2x128xbf16>
    %c0_6 = arith.constant 0 : index
    %c0_7 = arith.constant 0 : index
    %10 = vector.load %arg4[%c0_6, %c0_7] : memref<128x128xbf16, #tpu.memory_space<vmem>>, vector<128x128xbf16>
    %cst_8 = arith.constant dense<0.000000e+00> : vector<2x128xf32>
    %11 = tpu.matmul %9, %10, %cst_8 {dimension_numbers = #tpu.dot_dimension_numbers<[1], [0], [0], [1], [0, 0, 1, 1], [], []>} : vector<2x128xbf16>, vector<128x128xbf16>, vector<2x128xf32> -> vector<2x128xf32>
    %c0_9 = arith.constant 0 : index
    %c0_10 = arith.constant 0 : index
    %12 = vector.load %arg5[%c0_9, %c0_10] : memref<1x128xf32, #tpu.memory_space<vmem>>, vector<1x128xf32>
    %13 = vector.broadcast %12 : vector<1x128xf32> to vector<2x128xf32>
    %14 = arith.addf %11, %13 : vector<2x128xf32>
    %cst_11 = arith.constant 0.000000e+00 : f32
    %15 = vector.broadcast %cst_11 : f32 to vector<2x128xf32>
    %16 = arith.maximumf %14, %15 : vector<2x128xf32>
    %17 = arith.truncf %16 : vector<2x128xf32> to vector<2x128xbf16>
    %c0_12 = arith.constant 0 : index
    %c0_13 = arith.constant 0 : index
    %18 = vector.load %arg6[%c0_12, %c0_13] : memref<128x128xbf16, #tpu.memory_space<vmem>>, vector<128x128xbf16>
    %cst_14 = arith.constant dense<0.000000e+00> : vector<2x128xf32>
    %19 = tpu.matmul %17, %18, %cst_14 {dimension_numbers = #tpu.dot_dimension_numbers<[1], [0], [0], [1], [0, 0, 1, 1], [], []>} : vector<2x128xbf16>, vector<128x128xbf16>, vector<2x128xf32> -> vector<2x128xf32>
    %c0_15 = arith.constant 0 : index
    %c0_16 = arith.constant 0 : index
    %20 = vector.load %arg7[%c0_15, %c0_16] : memref<1x128xf32, #tpu.memory_space<vmem>>, vector<1x128xf32>
    %21 = vector.broadcast %20 : vector<1x128xf32> to vector<2x128xf32>
    %22 = arith.addf %19, %21 : vector<2x128xf32>
    %cst_17 = arith.constant dense<0xFF800000> : vector<2xf32>
    %23 = vector.multi_reduction <maximumf>, %22, %cst_17 [1] : vector<2x128xf32> to vector<2xf32>
    %24 = vector.shape_cast %23 : vector<2xf32> to vector<2x1xf32>
    %25 = vector.broadcast %24 : vector<2x1xf32> to vector<2x128xf32>
    %26 = arith.subf %22, %25 : vector<2x128xf32>
    %27 = math.exp %26 : vector<2x128xf32>
    %cst_18 = arith.constant dense<0.000000e+00> : vector<2xf32>
    %28 = vector.multi_reduction <add>, %27, %cst_18 [1] : vector<2x128xf32> to vector<2xf32>
    %29 = vector.shape_cast %28 : vector<2xf32> to vector<2x1xf32>
    %cst_19 = arith.constant 1.000000e+00 : f32
    %30 = vector.broadcast %cst_19 : f32 to vector<2x1xf32>
    %31 = arith.divf %30, %29 : vector<2x1xf32>
    %32 = vector.extract_strided_slice %27 {offsets = [0, 0], sizes = [2, 8], strides = [1, 1]} : vector<2x128xf32> to vector<2x8xf32>
    %33 = vector.broadcast %31 : vector<2x1xf32> to vector<2x8xf32>
    %34 = arith.mulf %32, %33 : vector<2x8xf32>
    %c0_20 = arith.constant 0 : index
    %c0_21 = arith.constant 0 : index
    %35 = vector.load %arg8[%c0_20, %c0_21] : memref<2x8xf32, #tpu.memory_space<vmem>>, vector<2x8xf32>
    tpu.vector_store %arg8[%c0_20, %c0_21], %34 {strides = array<i32>} : memref<2x8xf32, #tpu.memory_space<vmem>>, vector<2x8xf32>,
    return
  }
  func.func @transform_0(%arg0: i32) -> (i32, i32) {
    %c0_i32 = arith.constant 0 : i32
    %c0_i32_0 = arith.constant 0 : i32
    return %arg0, %c0_i32 : i32, i32
  }
  func.func @transform_1(%arg0: i32) -> (i32, i32) {
    %c0_i32 = arith.constant 0 : i32
    %c0_i32_0 = arith.constant 0 : i32
    %c0_i32_1 = arith.constant 0 : i32
    return %c0_i32, %c0_i32_0 : i32, i32
  }
  func.func @transform_2(%arg0: i32) -> (i32, i32) {
    %c0_i32 = arith.constant 0 : i32
    %c0_i32_0 = arith.constant 0 : i32
    %c0_i32_1 = arith.constant 0 : i32
    return %c0_i32, %c0_i32_0 : i32, i32
  }
  func.func @transform_3(%arg0: i32) -> (i32, i32) {
    %c0_i32 = arith.constant 0 : i32
    %c0_i32_0 = arith.constant 0 : i32
    %c0_i32_1 = arith.constant 0 : i32
    return %c0_i32, %c0_i32_0 : i32, i32
  }
  func.func @transform_4(%arg0: i32) -> (i32, i32) {
    %c0_i32 = arith.constant 0 : i32
    %c0_i32_0 = arith.constant 0 : i32
    %c0_i32_1 = arith.constant 0 : i32
    return %c0_i32, %c0_i32_0 : i32, i32
  }
  func.func @transform_5(%arg0: i32) -> (i32, i32) {
    %c0_i32 = arith.constant 0 : i32
    %c0_i32_0 = arith.constant 0 : i32
    %c0_i32_1 = arith.constant 0 : i32
    return %c0_i32, %c0_i32_0 : i32, i32
  }
  func.func @transform_6(%arg0: i32) -> (i32, i32) {
    %c0_i32 = arith.constant 0 : i32
    %c0_i32_0 = arith.constant 0 : i32
    %c0_i32_1 = arith.constant 0 : i32
    return %c0_i32, %c0_i32_0 : i32, i32
  }
  func.func @transform_7(%arg0: i32) -> (i32, i32) {
    %c0_i32 = arith.constant 0 : i32
    %c0_i32_0 = arith.constant 0 : i32
    return %arg0, %c0_i32 : i32, i32
  }
}

</mosaic_0001>

<llo_original>
// kernel: policy_network_forward.1
$region0: #{policy_network_forward.1}
  #allocation0 [shape = 'u32[]', space=smem, size = 0x4, offset = 0x4, fixed_abs, tag = 'smem constant byte address 0x4 - core index']
  #allocation1 [shape = 'u32[72,128]{1,0:T(1,128)}', space=vmem, size = 0x9000, scoped, tag = 'internal scratch']
  %s0 = inlined_call_operand.hbm [shape: f32[2,16], index: 0, kind: input, shape index: {}]
  %s1 = inlined_call_operand.hbm [shape: bf16[16,128], index: 1, kind: input, shape index: {}]
  %s2 = inlined_call_operand.vmem [shape: f32[1,128], index: 2, kind: input, shape index: {}]
  %s3 = inlined_call_operand.hbm [shape: bf16[128,128], index: 3, kind: input, shape index: {}]
  %s4 = inlined_call_operand.vmem [shape: f32[1,128], index: 4, kind: input, shape index: {}]
  %s5 = inlined_call_operand.hbm [shape: bf16[128,128], index: 5, kind: input, shape index: {}]
  %s6 = inlined_call_operand.vmem [shape: f32[1,128], index: 6, kind: input, shape index: {}]
  %s7 = inlined_call_operand.hbm [shape: f32[2,8], index: 7, kind: output, shape index: {}]
  %s8 = sld [smem:[#allocation0]]
  $region54: #{policy_network_forward.1} parent=0
    _
  %s10 = ssub.s32 1, %s8
  %s11 = scalar_select 0, %s10, %s8
  $region1: #{policy_network_forward.1} parent=0
    #allocation2 [shape = 'u8[1024]{0}', space=vmem, size = 0x400, scoped, tag = 'input window, operand 0, single buffered']
    #allocation3 [shape = 's32[1]{0}', space=sflag, size = 0x4, scoped, tag = 'scoped memory for policy_network_forward.1']
    #allocation4 [shape = 's32[1]{0}', space=sflag, size = 0x4, scoped, tag = 'scoped memory for policy_network_forward.1']
    #allocation5 [shape = 'u8[4096]{0}', space=vmem, size = 0x1000, scoped, tag = 'input window, operand 1, single buffered']
    #allocation6 [shape = 's32[1]{0}', space=sflag, size = 0x4, scoped, tag = 'scoped memory for policy_network_forward.1']
    #allocation7 [shape = 'u8[32768]{0}', space=vmem, size = 0x8000, scoped, tag = 'input window, operand 3, single buffered']
    #allocation8 [shape = 'u8[32768]{0}', space=vmem, size = 0x8000, scoped, tag = 'input window, operand 5, single buffered']
    #allocation9 [shape = 's32[1]{0}', space=sflag, size = 0x4, scoped, tag = 'scoped memory for policy_network_forward.1']
    #allocation10 [shape = 'u8[1024]{0}', space=vmem, size = 0x400, scoped, tag = 'output window, operand 0, single buffered']
    %12 = vsyncpa [#allocation3], 0
    %13 = vsyncpa [#allocation6], 0
    %14 = vsyncpa [#allocation9], 0
    %15 = vsyncpa [#allocation4], 0
    // Predicated region
    $region2: #{policy_network_forward.1} parent=1 // pred_check
      _
    $region3: #{policy_network_forward.1} parent=1 // pred_check_branch
      %17 = sbr.rel (0) target = $region5
    $region4: #{policy_network_forward.1} parent=1 // pred_region
      %19 = vsyncadd [#allocation3], 0
      %s21 = sshll.u32 %s0, 4
      %s22 = int_to_ptr.hbm [resolvable:$true] %s21
      %s23 = sshll.u32 [#allocation2], 4
      %s24 = int_to_ptr.vmem [resolvable:$true] %s23
      %26 = dma.hbm_to_vmem [thread:$0]  %s22, 32, %s24, [#allocation3]
    $region5: #{policy_network_forward.1} parent=1 // pred_fallthru
      _
    // Predicated region
    $region6: #{policy_network_forward.1} parent=1 // pred_check
      _
    $region7: #{policy_network_forward.1} parent=1 // pred_check_branch
      %28 = sbr.rel (0) target = $region9
    $region8: #{policy_network_forward.1} parent=1 // pred_region
      %30 = vsyncadd [#allocation6], 0
      %s31 = sshll.u32 %s1, 4
      %s32 = int_to_ptr.hbm [resolvable:$true] %s31
      %s33 = sshll.u32 [#allocation5], 4
      %s34 = int_to_ptr.vmem [resolvable:$true] %s33
      %39 = dma.hbm_to_vmem [thread:$0]  %s32, 128, %s34, [#allocation6], 64, 64, 4
    $region9: #{policy_network_forward.1} parent=1 // pred_fallthru
      _
    // Predicated region
    $region10: #{policy_network_forward.1} parent=1 // pred_check
      _
    $region11: #{policy_network_forward.1} parent=1 // pred_check_branch
      %41 = sbr.rel (0) target = $region13
    $region12: #{policy_network_forward.1} parent=1 // pred_region
      _
    $region13: #{policy_network_forward.1} parent=1 // pred_fallthru
      _
    // Predicated region
    $region14: #{policy_network_forward.1} parent=1 // pred_check
      _
    $region15: #{policy_network_forward.1} parent=1 // pred_check_branch
      %43 = sbr.rel (0) target = $region17
    $region16: #{policy_network_forward.1} parent=1 // pred_region
      %45 = vsyncadd [#allocation6], 0
      %s46 = sshll.u32 %s3, 4
      %s47 = int_to_ptr.hbm [resolvable:$true] %s46
      %s48 = sshll.u32 [#allocation7], 4
      %s49 = int_to_ptr.vmem [resolvable:$true] %s48
      %54 = dma.hbm_to_vmem [thread:$0]  %s47, 1024, %s49, [#allocation6], 64, 64, 4
    $region17: #{policy_network_forward.1} parent=1 // pred_fallthru
      _
    // Predicated region
    $region18: #{policy_network_forward.1} parent=1 // pred_check
      _
    $region19: #{policy_network_forward.1} parent=1 // pred_check_branch
      %56 = sbr.rel (0) target = $region21
    $region20: #{policy_network_forward.1} parent=1 // pred_region
      _
    $region21: #{policy_network_forward.1} parent=1 // pred_fallthru
      _
    // Predicated region
    $region22: #{policy_network_forward.1} parent=1 // pred_check
      _
    $region23: #{policy_network_forward.1} parent=1 // pred_check_branch
      %58 = sbr.rel (0) target = $region25
    $region24: #{policy_network_forward.1} parent=1 // pred_region
      %60 = vsyncadd [#allocation9], 0
      %s61 = sshll.u32 %s5, 4
      %s62 = int_to_ptr.hbm [resolvable:$true] %s61
      %s63 = sshll.u32 [#allocation8], 4
      %s64 = int_to_ptr.vmem [resolvable:$true] %s63
      %69 = dma.hbm_to_vmem [thread:$0]  %s62, 1024, %s64, [#allocation9], 64, 64, 4
    $region25: #{policy_network_forward.1} parent=1 // pred_fallthru
      _
    // Predicated region
    $region26: #{policy_network_forward.1} parent=1 // pred_check
      _
    $region27: #{policy_network_forward.1} parent=1 // pred_check_branch
      %71 = sbr.rel (0) target = $region29
    $region28: #{policy_network_forward.1} parent=1 // pred_region
      _
    $region29: #{policy_network_forward.1} parent=1 // pred_fallthru
      _
    // Predicated region
    $region30: #{policy_network_forward.1} parent=1 // pred_check
      _
    $region31: #{policy_network_forward.1} parent=1 // pred_check_branch
      %73 = sbr.rel (0) target = $region33
    $region32: #{policy_network_forward.1} parent=1 // pred_region
      %75 = dma.done [#allocation3], 32
    $region33: #{policy_network_forward.1} parent=1 // pred_fallthru
      _
    // Predicated region
    $region34: #{policy_network_forward.1} parent=1 // pred_check
      _
    $region35: #{policy_network_forward.1} parent=1 // pred_check_branch
      %77 = sbr.rel (0) target = $region37
    $region36: #{policy_network_forward.1} parent=1 // pred_region
      %79 = dma.done [#allocation6], 128
    $region37: #{policy_network_forward.1} parent=1 // pred_fallthru
      _
    // Predicated region
    $region38: #{policy_network_forward.1} parent=1 // pred_check
      _
    $region39: #{policy_network_forward.1} parent=1 // pred_check_branch
      %81 = sbr.rel (0) target = $region41
    $region40: #{policy_network_forward.1} parent=1 // pred_region
      %83 = dma.done [#allocation6], 1024
    $region41: #{policy_network_forward.1} parent=1 // pred_fallthru
      _
    // Predicated region
    $region42: #{policy_network_forward.1} parent=1 // pred_check
      _
    $region43: #{policy_network_forward.1} parent=1 // pred_check_branch
      %85 = sbr.rel (0) target = $region45
    $region44: #{policy_network_forward.1} parent=1 // pred_region
      %87 = dma.done [#allocation9], 1024
    $region45: #{policy_network_forward.1} parent=1 // pred_fallthru
      _
    %v89 = vld [vmem:[#allocation2] sm:$0x3]
    %v90 = vpack.c.bf16 %v89, %v89
    %v91 = vld [vmem:[#allocation5] sm:$0xf]
    %v92 = vld [vmem:[#allocation5 + $0x4] sm:$0xf]
    %v93 = vld [vmem:[%s2] sm:$0x1]
    %v95 = vperm.slane %v93, 0
    %v99 = vunpack.c.l.b16 %v91
    %v100 = vunpack.c.l.b16 %v92
    %v101 = vpack.c.b16 %v100, %v99
    %vm103 = vcmask 130048
    %v105 = vsel %vm103, %v90, 0
    %107 = vmatpush.bf16.msra.mxu0 0
    %108 = vmatpush.bf16.msra.mxu0 0
    %109 = vmatpush.bf16.msra.mxu0 0
    %110 = vmatpush.bf16.msra.mxu0 0
    %111 = vmatpush.bf16.msra.mxu0 0
    %112 = vmatpush.bf16.msra.mxu0 0
    %113 = vmatpush.bf16.msra.mxu0 0
    %114 = vmatpush.bf16.msra.mxu0 %v101
    %115 = vmatmul.bf16.gmra.mxu0 %v105
    %v116 = vpop.f32.mrf.mxu0
    %v117 = vadd.f32 %v95, %v116
    %v118 = vpop.f32.mrf.mxu0
    %119 = vdwg.mxu0
    %v120 = vmax.f32 %v117, 0.0
    %v121 = vpack.c.bf16 %v120, %v120
    %v122 = vld [vmem:[#allocation7] sm:$0xf]
    %v123 = vld [vmem:[#allocation7 + $0x4] sm:$0xf]
    %v124 = vld [vmem:[#allocation7 + $0x8] sm:$0xf]
    %v125 = vld [vmem:[#allocation7 + $0xc] sm:$0xf]
    %v126 = vld [vmem:[#allocation7 + $0x10] sm:$0xf]
    %v127 = vld [vmem:[#allocation7 + $0x14] sm:$0xf]
    %v128 = vld [vmem:[#allocation7 + $0x18] sm:$0xf]
    %v129 = vld [vmem:[#allocation7 + $0x1c] sm:$0xf]
    %v130 = vld [vmem:[#allocation7 + $0x20] sm:$0xf]
    %v131 = vld [vmem:[#allocation7 + $0x24] sm:$0xf]
    %v132 = vld [vmem:[#allocation7 + $0x28] sm:$0xf]
    %v133 = vld [vmem:[#allocation7 + $0x2c] sm:$0xf]
    %v134 = vld [vmem:[#allocation7 + $0x30] sm:$0xf]
    %v135 = vld [vmem:[#allocation7 + $0x34] sm:$0xf]
    %v136 = vld [vmem:[#allocation7 + $0x38] sm:$0xf]
    %v137 = vld [vmem:[#allocation7 + $0x3c] sm:$0xf]
    %v138 = vld [vmem:[%s4] sm:$0x1]
    %v140 = vperm.slane %v138, 0
    %v158 = vunpack.c.l.b16 %v122
    %v159 = vunpack.c.l.b16 %v123
    %v160 = vunpack.c.l.b16 %v124
    %v161 = vunpack.c.l.b16 %v125
    %v162 = vunpack.c.l.b16 %v126
    %v163 = vunpack.c.l.b16 %v127
    %v164 = vunpack.c.l.b16 %v128
    %v165 = vunpack.c.l.b16 %v129
    %v166 = vunpack.c.l.b16 %v130
    %v167 = vunpack.c.l.b16 %v131
    %v168 = vunpack.c.l.b16 %v132
    %v169 = vunpack.c.l.b16 %v133
    %v170 = vunpack.c.l.b16 %v134
    %v171 = vunpack.c.l.b16 %v135
    %v172 = vunpack.c.l.b16 %v136
    %v173 = vunpack.c.l.b16 %v137
    %v174 = vpack.c.b16 %v159, %v158
    %v175 = vpack.c.b16 %v161, %v160
    %v176 = vpack.c.b16 %v163, %v162
    %v177 = vpack.c.b16 %v165, %v164
    %v178 = vpack.c.b16 %v167, %v166
    %v179 = vpack.c.b16 %v169, %v168
    %v180 = vpack.c.b16 %v171, %v170
    %v181 = vpack.c.b16 %v173, %v172
    %190 = vmatpush.bf16.msra.mxu0 %v181
    %191 = vmatpush.bf16.msra.mxu0 %v180
    %192 = vmatpush.bf16.msra.mxu0 %v179
    %193 = vmatpush.bf16.msra.mxu0 %v178
    %194 = vmatpush.bf16.msra.mxu0 %v177
    %195 = vmatpush.bf16.msra.mxu0 %v176
    %196 = vmatpush.bf16.msra.mxu0 %v175
    %197 = vmatpush.bf16.msra.mxu0 %v174
    %198 = vmatmul.bf16.gmra.mxu0 %v121
    %v199 = vpop.f32.mrf.mxu0
    %v200 = vadd.f32 %v140, %v199
    %v201 = vpop.f32.mrf.mxu0
    %202 = vdwg.mxu0
    %v203 = vmax.f32 %v200, 0.0
    %v204 = vpack.c.bf16 %v203, %v203
    %v205 = vld [vmem:[#allocation8] sm:$0xf]
    %v206 = vld [vmem:[#allocation8 + $0x4] sm:$0xf]
    %v207 = vld [vmem:[#allocation8 + $0x8] sm:$0xf]
    %v208 = vld [vmem:[#allocation8 + $0xc] sm:$0xf]
    %v209 = vld [vmem:[#allocation8 + $0x10] sm:$0xf]
    %v210 = vld [vmem:[#allocation8 + $0x14] sm:$0xf]
    %v211 = vld [vmem:[#allocation8 + $0x18] sm:$0xf]
    %v212 = vld [vmem:[#allocation8 + $0x1c] sm:$0xf]
    %v213 = vld [vmem:[#allocation8 + $0x20] sm:$0xf]
    %v214 = vld [vmem:[#allocation8 + $0x24] sm:$0xf]
    %v215 = vld [vmem:[#allocation8 + $0x28] sm:$0xf]
    %v216 = vld [vmem:[#allocation8 + $0x2c] sm:$0xf]
    %v217 = vld [vmem:[#allocation8 + $0x30] sm:$0xf]
    %v218 = vld [vmem:[#allocation8 + $0x34] sm:$0xf]
    %v219 = vld [vmem:[#allocation8 + $0x38] sm:$0xf]
    %v220 = vld [vmem:[#allocation8 + $0x3c] sm:$0xf]
    %v221 = vld [vmem:[%s6] sm:$0x1]
    %v223 = vperm.slane %v221, 0
    %v241 = vunpack.c.l.b16 %v205
    %v242 = vunpack.c.l.b16 %v206
    %v243 = vunpack.c.l.b16 %v207
    %v244 = vunpack.c.l.b16 %v208
    %v245 = vunpack.c.l.b16 %v209
    %v246 = vunpack.c.l.b16 %v210
    %v247 = vunpack.c.l.b16 %v211
    %v248 = vunpack.c.l.b16 %v212
    %v249 = vunpack.c.l.b16 %v213
    %v250 = vunpack.c.l.b16 %v214
    %v251 = vunpack.c.l.b16 %v215
    %v252 = vunpack.c.l.b16 %v216
    %v253 = vunpack.c.l.b16 %v217
    %v254 = vunpack.c.l.b16 %v218
    %v255 = vunpack.c.l.b16 %v219
    %v256 = vunpack.c.l.b16 %v220
    %v257 = vpack.c.b16 %v242, %v241
    %v258 = vpack.c.b16 %v244, %v243
    %v259 = vpack.c.b16 %v246, %v245
    %v260 = vpack.c.b16 %v248, %v247
    %v261 = vpack.c.b16 %v250, %v249
    %v262 = vpack.c.b16 %v252, %v251
    %v263 = vpack.c.b16 %v254, %v253
    %v264 = vpack.c.b16 %v256, %v255
    %273 = vmatpush.bf16.msra.mxu0 %v264
    %274 = vmatpush.bf16.msra.mxu0 %v263
    %275 = vmatpush.bf16.msra.mxu0 %v262
    %276 = vmatpush.bf16.msra.mxu0 %v261
    %277 = vmatpush.bf16.msra.mxu0 %v260
    %278 = vmatpush.bf16.msra.mxu0 %v259
    %279 = vmatpush.bf16.msra.mxu0 %v258
    %280 = vmatpush.bf16.msra.mxu0 %v257
    %281 = vmatmul.bf16.gmra.mxu0 %v204
    %v282 = vpop.f32.mrf.mxu0
    %v283 = vadd.f32 %v223, %v282
    %v284 = vpop.f32.mrf.mxu0
    %285 = vdwg.mxu0
    %vm286 = vcmask 1041408
    %v287 = vsel %vm286, %v283, -inf
    %288 = vmax.xlane.f32.xlu0 %v287
    %v289 = vpop.xlane.xlu0 %288
    %v290 = vsub.f32 %v283, %v289
    %v291 = vmul.f32 %v290, 1.442695
    %v292 = vpow.pop %v291
    %v293 = vsel %vm286, %v292, 0.0
    %294 = vadd.xlane.f32.xlu0 %v293
    %v295 = vpop.xlane.xlu0 %294
    %v296 = vrcp.pop %v295
    %v297 = vmul.f32 %v295, %v296
    %v298 = vsub.f32 1.0, %v297
    %v299 = vmul.f32 %v296, %v298
    %v300 = vadd.f32 %v296, %v299
    %vm301 = vweird.f32 %v295
    %vm302 = vweird.f32 %v296
    %vm303 = vmor %vm301, %vm302
    %v304 = vsel %vm303, %v296, %v300
    %v305 = vand.u32 2147483647, %v295
    %vm306 = vcmp.eq.f32.partialorder %v305, 8.507059e+37
    %v307 = vand.u32 %v295, 2147483648
    %v308 = vor.u32 1.1754944e-38, %v307
    %v309 = vsel %vm306, %v308, %v304
    %v310 = vmul.f32 1.0, %v309
    %v311 = vmul.f32 %v292, %v310
    %vm312 = vcmask 58368
    %313 = vst.msk [vmem:[#allocation10] sm:$0x3] %vm312, %v311
    // Predicated region
    $region46: #{policy_network_forward.1} parent=1 // pred_check
      _
    $region47: #{policy_network_forward.1} parent=1 // pred_check_branch
      %315 = sbr.rel (0) target = $region49
    $region48: #{policy_network_forward.1} parent=1 // pred_region
      %317 = vsyncadd [#allocation4], 0
      %s319 = sshll.u32 [#allocation10], 4
      %s320 = int_to_ptr.vmem [resolvable:$true] %s319
      %s321 = sshll.u32 %s7, 4
      %s322 = int_to_ptr.hbm [resolvable:$true] %s321
      %324 = dma.vmem_to_hbm [thread:$0]  %s320, 32, %s322, [#allocation4]
    $region49: #{policy_network_forward.1} parent=1 // pred_fallthru
      _
    // Predicated region
    $region50: #{policy_network_forward.1} parent=1 // pred_check
      _
    $region51: #{policy_network_forward.1} parent=1 // pred_check_branch
      %326 = sbr.rel (0) target = $region53
    $region52: #{policy_network_forward.1} parent=1 // pred_region
      %328 = dma.done [#allocation4], 32
    $region53: #{policy_network_forward.1} parent=1 // pred_fallthru
      _
    %329 = vsyncpa [#allocation3], 1
    %330 = vsyncpa [#allocation6], 1
    %331 = vsyncpa [#allocation9], 1
    %332 = vsyncpa [#allocation4], 1

</llo_original>
